<compile_context>
chip_gen: v5e
topology: v5e:2x2
jax: 0.10.0
libtpu: 0.0.40
codegen_flags: <defaults>
</compile_context>

<pallas_src>
import jax
import jax.numpy as jnp
from jax.experimental import pallas as pl
from jax.experimental.pallas import tpu as pltpu

HP = 128               # padded hidden / RBF width (lane-aligned)
DEFAULT_TILE_B = 512   # batch tile upper bound (sweep 128/256/512 on real workloads)


def _round_up(n, m):
    return ((n + m - 1) // m) * m


def rbf_network_kernel(x_ref, ct_ref, w_ref, consts_ref, out_ref):
    # x_ref:      (TB, D)       input batch tile
    # ct_ref:     (D, HP)       centers^T, padded lanes replicate center 0
    # w_ref:      (4, HP, HP)   [w1*rbf_w, w2, w3, w4] zero-padded
    # consts_ref: (8, HP)       rows 0..3 = b1..b4, row 4 = w5, row 5 lane0 = b5
    # out_ref:    (TB, 1)       scalar output per row
    x = x_ref[...]                                   # (TB, D)
    ct = ct_ref[...]                                 # (D, HP)
    consts = consts_ref[...]                         # (8, HP)
    b1 = consts[0:1, :]
    b2 = consts[1:2, :]
    b3 = consts[2:3, :]
    b4 = consts[3:4, :]
    w5 = consts[4:5, :]
    b5 = consts[5:6, 0:1]                            # (1, 1) scalar

    # Squared distances on the VPU: sum over the (small, static) input dims of
    # (x[:, k] - c^T[k, :])^2.  Exact match to torch.norm(x - centers, dim=2).
    d2 = None
    for k in range(x.shape[1]):                      # D is static (== 4)
        diff = x[:, k:k + 1] - ct[k:k + 1, :]        # (TB, HP) broadcast
        sq = diff * diff
        d2 = sq if d2 is None else d2 + sq
    d = jnp.sqrt(d2)                                 # (TB, HP)

    # Wendland-like polynomial: (1-d)^6 * (35 d^2 + 18 d + 3) / 3
    # (not clamped at d > 1: matches the PyTorch reference).
    om = 1.0 - d
    p2 = om * om
    p6 = p2 * p2 * p2
    h = p6 * (35.0 * d2 + 18.0 * d + 3.0) * (1.0 / 3.0)   # (TB, HP)

    # rbf_w is folded into w_ref[0]; padded lanes hit exact-zero weight rows.
    h = jnp.maximum(jnp.dot(h, w_ref[0], preferred_element_type=jnp.float32) + b1, 0.0)
    h = jnp.maximum(jnp.dot(h, w_ref[1], preferred_element_type=jnp.float32) + b2, 0.0)
    h = jnp.maximum(jnp.dot(h, w_ref[2], preferred_element_type=jnp.float32) + b3, 0.0)
    h = jnp.maximum(jnp.dot(h, w_ref[3], preferred_element_type=jnp.float32) + b4, 0.0)

    # Final (hidden -> 1) layer as a per-row lane reduce on the VPU/XLU.
    out = jnp.sum(h * w5, axis=1, keepdims=True) + b5      # (TB, 1)
    out_ref[...] = out.astype(out_ref.dtype)


def rbf_network_forward(x, packed, *, tile_b=DEFAULT_TILE_B):
    """x: (B, in_dims) f32. packed: (centers_t, w_stack, consts) from pack_params."""
    centers_t, w_stack, consts = packed
    B, D = x.shape

    # Choose the batch tile: as large as possible (<= tile_b), sublane-aligned.
    tb = min(tile_b, _round_up(B, 8))
    tb = _round_up(tb, 8)
    # v7x: keep >= 2 blocks when the batch is large enough so the "parallel"
    # grid axis can shard across both TensorCores (no effect on v5e/v6e).
    if _round_up(B, tb) // tb < 2 and tb >= 256:
        tb = _round_up(tb // 2, 8)

    Bp = _round_up(B, tb)
    if Bp != B:
        x = jnp.pad(x, ((0, Bp - B), (0, 0)))
    nb = Bp // tb

    out = pl.pallas_call(
        rbf_network_kernel,
        out_shape=jax.ShapeDtypeStruct((Bp, 1), jnp.float32),
        grid_spec=pltpu.PrefetchScalarGridSpec(
            num_scalar_prefetch=0,
            grid=(nb,),
            in_specs=[
                pl.BlockSpec((tb, D), lambda i: (i, 0)),         # x: tiled over batch
                pl.BlockSpec((D, HP), lambda i: (0, 0)),          # centers^T: resident
                pl.BlockSpec((4, HP, HP), lambda i: (0, 0, 0)),   # weights: resident
                pl.BlockSpec((8, HP), lambda i: (0, 0)),          # biases / w5: resident
            ],
            out_specs=pl.BlockSpec((tb, 1), lambda i: (i, 0)),
        ),
        compiler_params=pltpu.CompilerParams(
            dimension_semantics=("parallel",),
        ),
    )(x, centers_t, w_stack, consts)
    return out[:B] if Bp != B else out


def init_params(key, in_dims, out_dims, hidden=100):
    """Natural (unpadded) parameter shapes matching the PyTorch module."""
    keys = jax.random.split(key, 12)

    def lin(kw, kb, fan_in, fan_out):
        bound = 1.0 / (fan_in ** 0.5)
        w = jax.random.uniform(kw, (fan_in, fan_out), jnp.float32, -bound, bound)
        b = jax.random.uniform(kb, (fan_out,), jnp.float32, -bound, bound)
        return w, b

    centers = jax.random.uniform(keys[0], (out_dims, in_dims), jnp.float32, -1.0, 1.0)
    rbf_w = jax.random.uniform(keys[1], (out_dims,), jnp.float32, -1.0, 1.0)
    w1, b1 = lin(keys[2], keys[3], out_dims, hidden)
    w2, b2 = lin(keys[4], keys[5], hidden, hidden)
    w3, b3 = lin(keys[6], keys[7], hidden, hidden)
    w4, b4 = lin(keys[8], keys[9], hidden, hidden)
    w5, b5 = lin(keys[10], keys[11], hidden, 1)
    return dict(centers=centers, rbf_w=rbf_w,
                w1=w1, b1=b1, w2=w2, b2=b2, w3=w3, b3=b3,
                w4=w4, b4=b4, w5=w5, b5=b5)


def pack_params(params, in_dims, out_dims, hidden=100):
    """Pack/pad all parameters into 3 lane-aligned tensors for the kernel."""
    assert out_dims <= HP and hidden <= HP

    centers = params["centers"]                               # (O, D)
    # Padded lanes replicate center 0 (their RBF value is multiplied by exact
    # zero weights, so this only keeps them numerically in-range).
    centers_t = jnp.tile(centers[0][:, None], (1, HP)).astype(jnp.float32)
    centers_t = centers_t.at[:, :out_dims].set(centers.T)

    # Fold the RBF weights into the first linear layer: w1'[o,h] = rbf_w[o]*w1[o,h].
    w1f = params["rbf_w"][:, None] * params["w1"]             # (O, hidden)

    w_stack = jnp.zeros((4, HP, HP), jnp.float32)
    w_stack = w_stack.at[0, :out_dims, :hidden].set(w1f)
    w_stack = w_stack.at[1, :hidden, :hidden].set(params["w2"])
    w_stack = w_stack.at[2, :hidden, :hidden].set(params["w3"])
    w_stack = w_stack.at[3, :hidden, :hidden].set(params["w4"])

    consts = jnp.zeros((8, HP), jnp.float32)
    consts = consts.at[0, :hidden].set(params["b1"])
    consts = consts.at[1, :hidden].set(params["b2"])
    consts = consts.at[2, :hidden].set(params["b3"])
    consts = consts.at[3, :hidden].set(params["b4"])
    consts = consts.at[4, :hidden].set(params["w5"][:, 0])    # final-layer weights
    consts = consts.at[5, 0].set(params["b5"][0])             # final-layer bias
    return centers_t, w_stack, consts


def reference_forward(x, params):
    """Pure-JAX reference mirroring the PyTorch forward exactly."""
    c = params["centers"]                          # (O, D)
    diff = x[:, None, :] - c[None, :, :]           # (B, O, D)
    d = jnp.sqrt(jnp.sum(diff * diff, axis=2))     # (B, O) == torch.norm(dim=2)
    rbf = (1.0 - d) ** 6 * (35.0 * d * d + 18.0 * d + 3.0) / 3.0
    h = rbf * params["rbf_w"][None, :]
    h = jax.nn.relu(h @ params["w1"] + params["b1"])
    h = jax.nn.relu(h @ params["w2"] + params["b2"])
    h = jax.nn.relu(h @ params["w3"] + params["b3"])
    h = jax.nn.relu(h @ params["w4"] + params["b4"])
    return h @ params["w5"] + params["b5"]


if __name__ == "__main__":
    IN_DIMS, OUT_DIMS, HIDDEN = 4, 32, 100

    key = jax.random.PRNGKey(0)
    kx, kp, kx2 = jax.random.split(key, 3)
    params = init_params(kp, IN_DIMS, OUT_DIMS, HIDDEN)
    packed = pack_params(params, IN_DIMS, OUT_DIMS, HIDDEN)

    ok = True

    # Small batch (single block).
    x_small = jax.random.uniform(kx, (8, IN_DIMS), jnp.float32, -1.0, 1.0)
    out_small = jax.block_until_ready(rbf_network_forward(x_small, packed))
    ref_small = reference_forward(x_small, params)
    ok &= out_small.shape == (8, 1)
    ok &= bool(jnp.allclose(out_small, ref_small, atol=1e-4, rtol=1e-4))

    # Larger batch exercising padding + multiple grid blocks.
    x_big = jax.random.uniform(kx2, (300, IN_DIMS), jnp.float32, -1.0, 1.0)
    out_big = jax.block_until_ready(rbf_network_forward(x_big, packed, tile_b=128))
    ref_big = reference_forward(x_big, params)
    ok &= out_big.shape == (300, 1)
    ok &= bool(jnp.allclose(out_big, ref_big, atol=1e-4, rtol=1e-4))

    assert ok, "kernel output mismatch vs reference"
    print("KERNEL_OK")
</pallas_src>

<mosaic_0001>
module attributes {stable_mosaic.version = 11 : i64} {
  func.func @rbf_network_kernel(%arg0: i32, %arg1: memref<8x4xf32, #tpu.memory_space<vmem>>, %arg2: memref<4x128xf32, #tpu.memory_space<vmem>>, %arg3: memref<4x128x128xf32, #tpu.memory_space<vmem>>, %arg4: memref<8x128xf32, #tpu.memory_space<vmem>>, %arg5: memref<8x1xf32, #tpu.memory_space<vmem>>) attributes {dimension_semantics = [#tpu.dimension_semantics<parallel>], iteration_bounds = array<i64: 1>, scalar_prefetch = 0 : i64, scratch_operands = 0 : i64, tpu.core_type = #tpu.core_type<tc>, window_params = [{transform_indices = @transform_0, window_bounds = array<i64: 8, 4>}, {pipeline_mode = #tpu.pipeline_mode<synchronous>, transform_indices = @transform_1, window_bounds = array<i64: 4, 128>}, {pipeline_mode = #tpu.pipeline_mode<synchronous>, transform_indices = @transform_2, window_bounds = array<i64: 4, 128, 128>}, {pipeline_mode = #tpu.pipeline_mode<synchronous>, transform_indices = @transform_3, window_bounds = array<i64: 8, 128>}, {transform_indices = @transform_4, window_bounds = array<i64: 8, 1>}]} {
    %c0 = arith.constant 0 : index
    %c0_0 = arith.constant 0 : index
    %0 = vector.load %arg1[%c0, %c0_0] : memref<8x4xf32, #tpu.memory_space<vmem>>, vector<8x4xf32>
    %c0_1 = arith.constant 0 : index
    %c0_2 = arith.constant 0 : index
    %1 = vector.load %arg2[%c0_1, %c0_2] : memref<4x128xf32, #tpu.memory_space<vmem>>, vector<4x128xf32>
    %c0_3 = arith.constant 0 : index
    %c0_4 = arith.constant 0 : index
    %2 = vector.load %arg4[%c0_3, %c0_4] : memref<8x128xf32, #tpu.memory_space<vmem>>, vector<8x128xf32>
    %3 = vector.extract_strided_slice %2 {offsets = [0, 0], sizes = [1, 128], strides = [1, 1]} : vector<8x128xf32> to vector<1x128xf32>
    %4 = vector.extract_strided_slice %2 {offsets = [1, 0], sizes = [1, 128], strides = [1, 1]} : vector<8x128xf32> to vector<1x128xf32>
    %5 = vector.extract_strided_slice %2 {offsets = [2, 0], sizes = [1, 128], strides = [1, 1]} : vector<8x128xf32> to vector<1x128xf32>
    %6 = vector.extract_strided_slice %2 {offsets = [3, 0], sizes = [1, 128], strides = [1, 1]} : vector<8x128xf32> to vector<1x128xf32>
    %7 = vector.extract_strided_slice %2 {offsets = [4, 0], sizes = [1, 128], strides = [1, 1]} : vector<8x128xf32> to vector<1x128xf32>
    %8 = vector.extract_strided_slice %2 {offsets = [5, 0], sizes = [1, 1], strides = [1, 1]} : vector<8x128xf32> to vector<1x1xf32>
    %9 = vector.extract_strided_slice %0 {offsets = [0, 0], sizes = [8, 1], strides = [1, 1]} : vector<8x4xf32> to vector<8x1xf32>
    %10 = vector.extract_strided_slice %1 {offsets = [0, 0], sizes = [1, 128], strides = [1, 1]} : vector<4x128xf32> to vector<1x128xf32>
    %11 = vector.broadcast %9 : vector<8x1xf32> to vector<8x128xf32>
    %12 = vector.broadcast %10 : vector<1x128xf32> to vector<8x128xf32>
    %13 = arith.subf %11, %12 : vector<8x128xf32>
    %14 = arith.mulf %13, %13 : vector<8x128xf32>
    %15 = vector.extract_strided_slice %0 {offsets = [0, 1], sizes = [8, 1], strides = [1, 1]} : vector<8x4xf32> to vector<8x1xf32>
    %16 = vector.extract_strided_slice %1 {offsets = [1, 0], sizes = [1, 128], strides = [1, 1]} : vector<4x128xf32> to vector<1x128xf32>
    %17 = vector.broadcast %15 : vector<8x1xf32> to vector<8x128xf32>
    %18 = vector.broadcast %16 : vector<1x128xf32> to vector<8x128xf32>
    %19 = arith.subf %17, %18 : vector<8x128xf32>
    %20 = arith.mulf %19, %19 : vector<8x128xf32>
    %21 = arith.addf %14, %20 : vector<8x128xf32>
    %22 = vector.extract_strided_slice %0 {offsets = [0, 2], sizes = [8, 1], strides = [1, 1]} : vector<8x4xf32> to vector<8x1xf32>
    %23 = vector.extract_strided_slice %1 {offsets = [2, 0], sizes = [1, 128], strides = [1, 1]} : vector<4x128xf32> to vector<1x128xf32>
    %24 = vector.broadcast %22 : vector<8x1xf32> to vector<8x128xf32>
    %25 = vector.broadcast %23 : vector<1x128xf32> to vector<8x128xf32>
    %26 = arith.subf %24, %25 : vector<8x128xf32>
    %27 = arith.mulf %26, %26 : vector<8x128xf32>
    %28 = arith.addf %21, %27 : vector<8x128xf32>
    %29 = vector.extract_strided_slice %0 {offsets = [0, 3], sizes = [8, 1], strides = [1, 1]} : vector<8x4xf32> to vector<8x1xf32>
    %30 = vector.extract_strided_slice %1 {offsets = [3, 0], sizes = [1, 128], strides = [1, 1]} : vector<4x128xf32> to vector<1x128xf32>
    %31 = vector.broadcast %29 : vector<8x1xf32> to vector<8x128xf32>
    %32 = vector.broadcast %30 : vector<1x128xf32> to vector<8x128xf32>
    %33 = arith.subf %31, %32 : vector<8x128xf32>
    %34 = arith.mulf %33, %33 : vector<8x128xf32>
    %35 = arith.addf %28, %34 : vector<8x128xf32>
    %36 = math.sqrt %35 : vector<8x128xf32>
    %cst = arith.constant 1.000000e+00 : f32
    %37 = vector.broadcast %cst : f32 to vector<8x128xf32>
    %38 = arith.subf %37, %36 : vector<8x128xf32>
    %39 = arith.mulf %38, %38 : vector<8x128xf32>
    %40 = arith.mulf %39, %39 : vector<8x128xf32>
    %41 = arith.mulf %40, %39 : vector<8x128xf32>
    %cst_5 = arith.constant 3.500000e+01 : f32
    %42 = vector.broadcast %cst_5 : f32 to vector<8x128xf32>
    %43 = arith.mulf %42, %35 : vector<8x128xf32>
    %cst_6 = arith.constant 1.800000e+01 : f32
    %44 = vector.broadcast %cst_6 : f32 to vector<8x128xf32>
    %45 = arith.mulf %44, %36 : vector<8x128xf32>
    %46 = arith.addf %43, %45 : vector<8x128xf32>
    %cst_7 = arith.constant 3.000000e+00 : f32
    %47 = vector.broadcast %cst_7 : f32 to vector<8x128xf32>
    %48 = arith.addf %46, %47 : vector<8x128xf32>
    %49 = arith.mulf %41, %48 : vector<8x128xf32>
    %cst_8 = arith.constant 0.333333343 : f32
    %50 = vector.broadcast %cst_8 : f32 to vector<8x128xf32>
    %51 = arith.mulf %49, %50 : vector<8x128xf32>
    %c0_9 = arith.constant 0 : index
    %c0_10 = arith.constant 0 : index
    %c0_11 = arith.constant 0 : index
    %52 = vector.load %arg3[%c0_9, %c0_10, %c0_11] : memref<4x128x128xf32, #tpu.memory_space<vmem>>, vector<1x128x128xf32>
    %53 = vector.shape_cast %52 : vector<1x128x128xf32> to vector<128x128xf32>
    %cst_12 = arith.constant dense<0.000000e+00> : vector<8x128xf32>
    %54 = tpu.matmul %51, %53, %cst_12 {dimension_numbers = #tpu.dot_dimension_numbers<[1], [0], [0], [1], [0, 0, 1, 1], [], []>} : vector<8x128xf32>, vector<128x128xf32>, vector<8x128xf32> -> vector<8x128xf32>
    %55 = vector.broadcast %3 : vector<1x128xf32> to vector<8x128xf32>
    %56 = arith.addf %54, %55 : vector<8x128xf32>
    %cst_13 = arith.constant 0.000000e+00 : f32
    %57 = vector.broadcast %cst_13 : f32 to vector<8x128xf32>
    %58 = arith.maximumf %56, %57 : vector<8x128xf32>
    %c1 = arith.constant 1 : index
    %c0_14 = arith.constant 0 : index
    %c0_15 = arith.constant 0 : index
    %59 = vector.load %arg3[%c1, %c0_14, %c0_15] : memref<4x128x128xf32, #tpu.memory_space<vmem>>, vector<1x128x128xf32>
    %60 = vector.shape_cast %59 : vector<1x128x128xf32> to vector<128x128xf32>
    %cst_16 = arith.constant dense<0.000000e+00> : vector<8x128xf32>
    %61 = tpu.matmul %58, %60, %cst_16 {dimension_numbers = #tpu.dot_dimension_numbers<[1], [0], [0], [1], [0, 0, 1, 1], [], []>} : vector<8x128xf32>, vector<128x128xf32>, vector<8x128xf32> -> vector<8x128xf32>
    %62 = vector.broadcast %4 : vector<1x128xf32> to vector<8x128xf32>
    %63 = arith.addf %61, %62 : vector<8x128xf32>
    %cst_17 = arith.constant 0.000000e+00 : f32
    %64 = vector.broadcast %cst_17 : f32 to vector<8x128xf32>
    %65 = arith.maximumf %63, %64 : vector<8x128xf32>
    %c2 = arith.constant 2 : index
    %c0_18 = arith.constant 0 : index
    %c0_19 = arith.constant 0 : index
    %66 = vector.load %arg3[%c2, %c0_18, %c0_19] : memref<4x128x128xf32, #tpu.memory_space<vmem>>, vector<1x128x128xf32>
    %67 = vector.shape_cast %66 : vector<1x128x128xf32> to vector<128x128xf32>
    %cst_20 = arith.constant dense<0.000000e+00> : vector<8x128xf32>
    %68 = tpu.matmul %65, %67, %cst_20 {dimension_numbers = #tpu.dot_dimension_numbers<[1], [0], [0], [1], [0, 0, 1, 1], [], []>} : vector<8x128xf32>, vector<128x128xf32>, vector<8x128xf32> -> vector<8x128xf32>
    %69 = vector.broadcast %5 : vector<1x128xf32> to vector<8x128xf32>
    %70 = arith.addf %68, %69 : vector<8x128xf32>
    %cst_21 = arith.constant 0.000000e+00 : f32
    %71 = vector.broadcast %cst_21 : f32 to vector<8x128xf32>
    %72 = arith.maximumf %70, %71 : vector<8x128xf32>
    %c3 = arith.constant 3 : index
    %c0_22 = arith.constant 0 : index
    %c0_23 = arith.constant 0 : index
    %73 = vector.load %arg3[%c3, %c0_22, %c0_23] : memref<4x128x128xf32, #tpu.memory_space<vmem>>, vector<1x128x128xf32>
    %74 = vector.shape_cast %73 : vector<1x128x128xf32> to vector<128x128xf32>
    %cst_24 = arith.constant dense<0.000000e+00> : vector<8x128xf32>
    %75 = tpu.matmul %72, %74, %cst_24 {dimension_numbers = #tpu.dot_dimension_numbers<[1], [0], [0], [1], [0, 0, 1, 1], [], []>} : vector<8x128xf32>, vector<128x128xf32>, vector<8x128xf32> -> vector<8x128xf32>
    %76 = vector.broadcast %6 : vector<1x128xf32> to vector<8x128xf32>
    %77 = arith.addf %75, %76 : vector<8x128xf32>
    %cst_25 = arith.constant 0.000000e+00 : f32
    %78 = vector.broadcast %cst_25 : f32 to vector<8x128xf32>
    %79 = arith.maximumf %77, %78 : vector<8x128xf32>
    %80 = vector.broadcast %7 : vector<1x128xf32> to vector<8x128xf32>
    %81 = arith.mulf %79, %80 : vector<8x128xf32>
    %cst_26 = arith.constant dense<0.000000e+00> : vector<8xf32>
    %82 = vector.multi_reduction <add>, %81, %cst_26 [1] : vector<8x128xf32> to vector<8xf32>
    %83 = vector.shape_cast %82 : vector<8xf32> to vector<8x1xf32>
    %84 = vector.broadcast %8 : vector<1x1xf32> to vector<8x1xf32>
    %85 = arith.addf %83, %84 : vector<8x1xf32>
    %c0_27 = arith.constant 0 : index
    %c0_28 = arith.constant 0 : index
    %86 = vector.load %arg5[%c0_27, %c0_28] : memref<8x1xf32, #tpu.memory_space<vmem>>, vector<8x1xf32>
    tpu.vector_store %arg5[%c0_27, %c0_28], %85 {strides = array<i32>} : memref<8x1xf32, #tpu.memory_space<vmem>>, vector<8x1xf32>,
    return
  }
  func.func @transform_0(%arg0: i32) -> (i32, i32) {
    %c0_i32 = arith.constant 0 : i32
    %c0_i32_0 = arith.constant 0 : i32
    return %arg0, %c0_i32 : i32, i32
  }
  func.func @transform_1(%arg0: i32) -> (i32, i32) {
    %c0_i32 = arith.constant 0 : i32
    %c0_i32_0 = arith.constant 0 : i32
    %c0_i32_1 = arith.constant 0 : i32
    return %c0_i32, %c0_i32_0 : i32, i32
  }
  func.func @transform_2(%arg0: i32) -> (i32, i32, i32) {
    %c0_i32 = arith.constant 0 : i32
    %c0_i32_0 = arith.constant 0 : i32
    %c0_i32_1 = arith.constant 0 : i32
    %c0_i32_2 = arith.constant 0 : i32
    return %c0_i32, %c0_i32_0, %c0_i32_1 : i32, i32, i32
  }
  func.func @transform_3(%arg0: i32) -> (i32, i32) {
    %c0_i32 = arith.constant 0 : i32
    %c0_i32_0 = arith.constant 0 : i32
    %c0_i32_1 = arith.constant 0 : i32
    return %c0_i32, %c0_i32_0 : i32, i32
  }
  func.func @transform_4(%arg0: i32) -> (i32, i32) {
    %c0_i32 = arith.constant 0 : i32
    %c0_i32_0 = arith.constant 0 : i32
    return %arg0, %c0_i32 : i32, i32
  }
}

</mosaic_0001>

<llo_original>
// kernel: tpu_custom_call.1
$region0: #{tpu_custom_call.1}
  #allocation0 [shape = 'u32[]', space=smem, size = 0x4, offset = 0x4, fixed_abs, tag = 'smem constant byte address 0x4 - core index']
  #allocation1 [shape = 'u32[72,128]{1,0:T(1,128)}', space=vmem, size = 0x9000, scoped, tag = 'internal scratch']
  %s0 = inlined_call_operand.vmem [shape: f32[8,4], index: 0, kind: input, shape index: {}]
  %s1 = inlined_call_operand.vmem [shape: f32[4,128], index: 1, kind: input, shape index: {}]
  %s2 = inlined_call_operand.hbm [shape: f32[4,128,128], index: 2, kind: input, shape index: {}]
  %s3 = inlined_call_operand.vmem [shape: f32[8,128], index: 3, kind: input, shape index: {}]
  %s4 = inlined_call_operand.vmem [shape: f32[8,1], index: 4, kind: output, shape index: {}]
  %s5 = sld [smem:[#allocation0]]
  $region30: #{tpu_custom_call.1} parent=0
    _
  %s7 = ssub.s32 1, %s5
  %s8 = scalar_select 0, %s7, %s5
  $region1: #{tpu_custom_call.1} parent=0
    #allocation2 [shape = 'u8[262144]{0}', space=vmem, size = 0x40000, scoped, tag = 'input window, operand 2, single buffered']
    #allocation3 [shape = 's32[1]{0}', space=sflag, size = 0x4, scoped, tag = 'scoped memory for tpu_custom_call.1']
    %9 = vsyncpa [#allocation3], 0
    // Predicated region
    $region2: #{tpu_custom_call.1} parent=1 // pred_check
      _
    $region3: #{tpu_custom_call.1} parent=1 // pred_check_branch
      %11 = sbr.rel (0) target = $region5
    $region4: #{tpu_custom_call.1} parent=1 // pred_region
      _
    $region5: #{tpu_custom_call.1} parent=1 // pred_fallthru
      _
    // Predicated region
    $region6: #{tpu_custom_call.1} parent=1 // pred_check
      _
    $region7: #{tpu_custom_call.1} parent=1 // pred_check_branch
      %13 = sbr.rel (0) target = $region9
    $region8: #{tpu_custom_call.1} parent=1 // pred_region
      _
    $region9: #{tpu_custom_call.1} parent=1 // pred_fallthru
      _
    // Predicated region
    $region10: #{tpu_custom_call.1} parent=1 // pred_check
      _
    $region11: #{tpu_custom_call.1} parent=1 // pred_check_branch
      %15 = sbr.rel (0) target = $region13
    $region12: #{tpu_custom_call.1} parent=1 // pred_region
      %17 = vsyncadd [#allocation3], 0
      %s18 = sshll.u32 %s2, 4
      %s19 = int_to_ptr.hbm [resolvable:$true] %s18
      %s20 = sshll.u32 [#allocation2], 4
      %s21 = int_to_ptr.vmem [resolvable:$true] %s20
      %26 = dma.hbm_to_vmem [thread:$0]  %s19, 8192, %s21, [#allocation3], 128, 128, 8
    $region13: #{tpu_custom_call.1} parent=1 // pred_fallthru
      _
    // Predicated region
    $region14: #{tpu_custom_call.1} parent=1 // pred_check
      _
    $region15: #{tpu_custom_call.1} parent=1 // pred_check_branch
      %28 = sbr.rel (0) target = $region17
    $region16: #{tpu_custom_call.1} parent=1 // pred_region
      _
    $region17: #{tpu_custom_call.1} parent=1 // pred_fallthru
      _
    // Predicated region
    $region18: #{tpu_custom_call.1} parent=1 // pred_check
      _
    $region19: #{tpu_custom_call.1} parent=1 // pred_check_branch
      %30 = sbr.rel (0) target = $region21
    $region20: #{tpu_custom_call.1} parent=1 // pred_region
      %32 = dma.done [#allocation3], 8192
    $region21: #{tpu_custom_call.1} parent=1 // pred_fallthru
      _
    %v33 = vld [vmem:[%s0] sm:$0xff]
    %v34 = vld [vmem:[%s1] sm:$0xf]
    %v35 = vld [vmem:[%s3] sm:$0xff]
    %37 = vset.pattern.permute.xlu0 0
    %38 = vperm.xlu0 %37, %v33
    %v39 = vpop.permute.xlu0 %38
    %v41 = vperm.slane %v34, 0
    %v42 = vsub.f32 %v39, %v41
    %v43 = vmul.f32 %v42, %v42
    %44 = vset.pattern.permute.xlu0 1
    %45 = vperm.xlu0 %44, %v33
    %v46 = vpop.permute.xlu0 %45
    %v48 = vperm.slane %v34, 1
    %v49 = vsub.f32 %v46, %v48
    %v50 = vmul.f32 %v49, %v49
    %v51 = vadd.f32 %v43, %v50
    %52 = vset.pattern.permute.xlu0 2
    %53 = vperm.xlu0 %52, %v33
    %v54 = vpop.permute.xlu0 %53
    %v56 = vperm.slane %v34, 2
    %v57 = vsub.f32 %v54, %v56
    %v58 = vmul.f32 %v57, %v57
    %v59 = vadd.f32 %v51, %v58
    %60 = vset.pattern.permute.xlu0 3
    %61 = vperm.xlu0 %60, %v33
    %v62 = vpop.permute.xlu0 %61
    %v64 = vperm.slane %v34, 3
    %v65 = vsub.f32 %v62, %v64
    %v66 = vmul.f32 %v65, %v65
    %v67 = vadd.f32 %v59, %v66
    %v68 = vrsqrt.pop %v67
    %v69 = vmul.f32 %v68, %v67
    %v70 = vmul.f32 %v69, %v68
    %v71 = vmul.f32 0.5, %v70
    %v72 = vsub.f32 1.5, %v71
    %v73 = vmul.f32 %v68, %v72
    %v74 = vmul.f32 %v67, %v73
    %vm75 = vcmp.eq.f32.partialorder %v67, inf
    %v76 = vsel %vm75, %v67, %v74
    %vm77 = vcmp.eq.f32.partialorder %v67, 0.0
    %v78 = vand.u32 %v67, 2147483648
    %v79 = vsel %vm77, %v78, %v76
    %v80 = vsub.f32 1.0, %v79
    %v81 = vmul.f32 %v80, %v80
    %v82 = vmul.f32 %v81, %v81
    %v83 = vmul.f32 %v82, %v81
    %v84 = vmul.f32 %v67, 35.0
    %v85 = vmul.f32 %v79, 18.0
    %v86 = vadd.f32 %v84, %v85
    %v87 = vadd.f32 %v86, 3.0
    %v88 = vmul.f32 %v83, %v87
    %v89 = vmul.f32 %v88, 0.33333334
    %v90 = vld [vmem:[#allocation2] sm:$0xff]
    %v91 = vld [vmem:[#allocation2 + $0x8] sm:$0xff]
    %v92 = vld [vmem:[#allocation2 + $0x10] sm:$0xff]
    %v93 = vld [vmem:[#allocation2 + $0x18] sm:$0xff]
    %v94 = vld [vmem:[#allocation2 + $0x20] sm:$0xff]
    %v95 = vld [vmem:[#allocation2 + $0x28] sm:$0xff]
    %v96 = vld [vmem:[#allocation2 + $0x30] sm:$0xff]
    %v97 = vld [vmem:[#allocation2 + $0x38] sm:$0xff]
    %v98 = vld [vmem:[#allocation2 + $0x40] sm:$0xff]
    %v99 = vld [vmem:[#allocation2 + $0x48] sm:$0xff]
    %v100 = vld [vmem:[#allocation2 + $0x50] sm:$0xff]
    %v101 = vld [vmem:[#allocation2 + $0x58] sm:$0xff]
    %v102 = vld [vmem:[#allocation2 + $0x60] sm:$0xff]
    %v103 = vld [vmem:[#allocation2 + $0x68] sm:$0xff]
    %v104 = vld [vmem:[#allocation2 + $0x70] sm:$0xff]
    %v105 = vld [vmem:[#allocation2 + $0x78] sm:$0xff]
    %v106 = vperm.slane %v35, 0
    %107 = vmatpush.msra.mxu0 %v105
    %108 = vmatpush.msra.mxu0 %v104
    %109 = vmatpush.msra.mxu0 %v103
    %110 = vmatpush.msra.mxu0 %v102
    %111 = vmatpush.msra.mxu0 %v101
    %112 = vmatpush.msra.mxu0 %v100
    %113 = vmatpush.msra.mxu0 %v99
    %114 = vmatpush.msra.mxu0 %v98
    %115 = vmatpush.msra.mxu0 %v97
    %116 = vmatpush.msra.mxu0 %v96
    %117 = vmatpush.msra.mxu0 %v95
    %118 = vmatpush.msra.mxu0 %v94
    %119 = vmatpush.msra.mxu0 %v93
    %120 = vmatpush.msra.mxu0 %v92
    %121 = vmatpush.msra.mxu0 %v91
    %122 = vmatpush.msra.mxu0 %v90
    %123 = vmatmul.f32.gmra.mxu0 %v89
    %v124 = vpop.f32.mrf.mxu0
    %v125 = vadd.f32 %v106, %v124
    %126 = vdwg.mxu0
    %v127 = vmax.f32 %v125, 0.0
    %s128 = scalar_lea.vmem [#allocation2], 128
    %v129 = vld [vmem:[%s128] sm:$0xff]
    %v130 = vld [vmem:[%s128 + $0x8] sm:$0xff]
    %v131 = vld [vmem:[%s128 + $0x10] sm:$0xff]
    %v132 = vld [vmem:[%s128 + $0x18] sm:$0xff]
    %v133 = vld [vmem:[%s128 + $0x20] sm:$0xff]
    %v134 = vld [vmem:[%s128 + $0x28] sm:$0xff]
    %v135 = vld [vmem:[%s128 + $0x30] sm:$0xff]
    %v136 = vld [vmem:[%s128 + $0x38] sm:$0xff]
    %v137 = vld [vmem:[%s128 + $0x40] sm:$0xff]
    %v138 = vld [vmem:[%s128 + $0x48] sm:$0xff]
    %v139 = vld [vmem:[%s128 + $0x50] sm:$0xff]
    %v140 = vld [vmem:[%s128 + $0x58] sm:$0xff]
    %v141 = vld [vmem:[%s128 + $0x60] sm:$0xff]
    %v142 = vld [vmem:[%s128 + $0x68] sm:$0xff]
    %v143 = vld [vmem:[%s128 + $0x70] sm:$0xff]
    %v144 = vld [vmem:[%s128 + $0x78] sm:$0xff]
    %v145 = vperm.slane %v35, 1
    %146 = vmatpush.msra.mxu0 %v144
    %147 = vmatpush.msra.mxu0 %v143
    %148 = vmatpush.msra.mxu0 %v142
    %149 = vmatpush.msra.mxu0 %v141
    %150 = vmatpush.msra.mxu0 %v140
    %151 = vmatpush.msra.mxu0 %v139
    %152 = vmatpush.msra.mxu0 %v138
    %153 = vmatpush.msra.mxu0 %v137
    %154 = vmatpush.msra.mxu0 %v136
    %155 = vmatpush.msra.mxu0 %v135
    %156 = vmatpush.msra.mxu0 %v134
    %157 = vmatpush.msra.mxu0 %v133
    %158 = vmatpush.msra.mxu0 %v132
    %159 = vmatpush.msra.mxu0 %v131
    %160 = vmatpush.msra.mxu0 %v130
    %161 = vmatpush.msra.mxu0 %v129
    %162 = vmatmul.f32.gmra.mxu0 %v127
    %v163 = vpop.f32.mrf.mxu0
    %v164 = vadd.f32 %v145, %v163
    %165 = vdwg.mxu0
    %v166 = vmax.f32 %v164, 0.0
    %s167 = scalar_lea.vmem [#allocation2], 256
    %v168 = vld [vmem:[%s167] sm:$0xff]
    %v169 = vld [vmem:[%s167 + $0x8] sm:$0xff]
    %v170 = vld [vmem:[%s167 + $0x10] sm:$0xff]
    %v171 = vld [vmem:[%s167 + $0x18] sm:$0xff]
    %v172 = vld [vmem:[%s167 + $0x20] sm:$0xff]
    %v173 = vld [vmem:[%s167 + $0x28] sm:$0xff]
    %v174 = vld [vmem:[%s167 + $0x30] sm:$0xff]
    %v175 = vld [vmem:[%s167 + $0x38] sm:$0xff]
    %v176 = vld [vmem:[%s167 + $0x40] sm:$0xff]
    %v177 = vld [vmem:[%s167 + $0x48] sm:$0xff]
    %v178 = vld [vmem:[%s167 + $0x50] sm:$0xff]
    %v179 = vld [vmem:[%s167 + $0x58] sm:$0xff]
    %v180 = vld [vmem:[%s167 + $0x60] sm:$0xff]
    %v181 = vld [vmem:[%s167 + $0x68] sm:$0xff]
    %v182 = vld [vmem:[%s167 + $0x70] sm:$0xff]
    %v183 = vld [vmem:[%s167 + $0x78] sm:$0xff]
    %v184 = vperm.slane %v35, 2
    %185 = vmatpush.msra.mxu0 %v183
    %186 = vmatpush.msra.mxu0 %v182
    %187 = vmatpush.msra.mxu0 %v181
    %188 = vmatpush.msra.mxu0 %v180
    %189 = vmatpush.msra.mxu0 %v179
    %190 = vmatpush.msra.mxu0 %v178
    %191 = vmatpush.msra.mxu0 %v177
    %192 = vmatpush.msra.mxu0 %v176
    %193 = vmatpush.msra.mxu0 %v175
    %194 = vmatpush.msra.mxu0 %v174
    %195 = vmatpush.msra.mxu0 %v173
    %196 = vmatpush.msra.mxu0 %v172
    %197 = vmatpush.msra.mxu0 %v171
    %198 = vmatpush.msra.mxu0 %v170
    %199 = vmatpush.msra.mxu0 %v169
    %200 = vmatpush.msra.mxu0 %v168
    %201 = vmatmul.f32.gmra.mxu0 %v166
    %v202 = vpop.f32.mrf.mxu0
    %v203 = vadd.f32 %v184, %v202
    %204 = vdwg.mxu0
    %v205 = vmax.f32 %v203, 0.0
    %s206 = scalar_lea.vmem [#allocation2], 384
    %v207 = vld [vmem:[%s206] sm:$0xff]
    %v208 = vld [vmem:[%s206 + $0x8] sm:$0xff]
    %v209 = vld [vmem:[%s206 + $0x10] sm:$0xff]
    %v210 = vld [vmem:[%s206 + $0x18] sm:$0xff]
    %v211 = vld [vmem:[%s206 + $0x20] sm:$0xff]
    %v212 = vld [vmem:[%s206 + $0x28] sm:$0xff]
    %v213 = vld [vmem:[%s206 + $0x30] sm:$0xff]
    %v214 = vld [vmem:[%s206 + $0x38] sm:$0xff]
    %v215 = vld [vmem:[%s206 + $0x40] sm:$0xff]
    %v216 = vld [vmem:[%s206 + $0x48] sm:$0xff]
    %v217 = vld [vmem:[%s206 + $0x50] sm:$0xff]
    %v218 = vld [vmem:[%s206 + $0x58] sm:$0xff]
    %v219 = vld [vmem:[%s206 + $0x60] sm:$0xff]
    %v220 = vld [vmem:[%s206 + $0x68] sm:$0xff]
    %v221 = vld [vmem:[%s206 + $0x70] sm:$0xff]
    %v222 = vld [vmem:[%s206 + $0x78] sm:$0xff]
    %v223 = vperm.slane %v35, 3
    %224 = vmatpush.msra.mxu0 %v222
    %225 = vmatpush.msra.mxu0 %v221
    %226 = vmatpush.msra.mxu0 %v220
    %227 = vmatpush.msra.mxu0 %v219
    %228 = vmatpush.msra.mxu0 %v218
    %229 = vmatpush.msra.mxu0 %v217
    %230 = vmatpush.msra.mxu0 %v216
    %231 = vmatpush.msra.mxu0 %v215
    %232 = vmatpush.msra.mxu0 %v214
    %233 = vmatpush.msra.mxu0 %v213
    %234 = vmatpush.msra.mxu0 %v212
    %235 = vmatpush.msra.mxu0 %v211
    %236 = vmatpush.msra.mxu0 %v210
    %237 = vmatpush.msra.mxu0 %v209
    %238 = vmatpush.msra.mxu0 %v208
    %239 = vmatpush.msra.mxu0 %v207
    %240 = vmatmul.f32.gmra.mxu0 %v205
    %v241 = vpop.f32.mrf.mxu0
    %v242 = vadd.f32 %v223, %v241
    %243 = vdwg.mxu0
    %v244 = vmax.f32 %v242, 0.0
    %v245 = vperm.slane %v35, 4
    %v246 = vmul.f32 %v244, %v245
    %247 = vadd.xlane.f32.xlu0 %v246
    %v248 = vpop.xlane.xlu0 %247
    %v249 = vperm.slane %v35, 5
    %v250 = vadd.f32 %v248, %v249
    %vm251 = vcmask 7168
    %252 = vst.msk [vmem:[%s4] sm:$0xff] %vm251, %v250
    // Predicated region
    $region22: #{tpu_custom_call.1} parent=1 // pred_check
      _
    $region23: #{tpu_custom_call.1} parent=1 // pred_check_branch
      %254 = sbr.rel (0) target = $region25
    $region24: #{tpu_custom_call.1} parent=1 // pred_region
      _
    $region25: #{tpu_custom_call.1} parent=1 // pred_fallthru
      _
    // Predicated region
    $region26: #{tpu_custom_call.1} parent=1 // pred_check
      _
    $region27: #{tpu_custom_call.1} parent=1 // pred_check_branch
      %256 = sbr.rel (0) target = $region29
    $region28: #{tpu_custom_call.1} parent=1 // pred_region
      _
    $region29: #{tpu_custom_call.1} parent=1 // pred_fallthru
      _
    %257 = vsyncpa [#allocation3], 1

</llo_original>
